<compile_context>
chip_gen: v6e
topology: v6e:2x2x1
jax: 0.10.0
libtpu: 0.0.40
codegen_flags: <defaults>
</compile_context>

<pallas_src>
import functools

import jax
import jax.numpy as jnp
from jax import lax
from jax.experimental import pallas as pl
from jax.experimental.pallas import tpu as pltpu

LANES = 128      # lane width; all feature dims are zero-padded to this
HID1 = 64        # first hidden dim of the MLP (hardcoded in the PyTorch module)
HID2 = 128       # second hidden dim
_EPS = 1e-5      # PyTorch LayerNorm default eps
_SUBLANE = 8     # sublane granularity (block second-to-last dim multiple)


# ----------------------------- Pallas kernels -------------------------------
def _mlp_layernorm(proj_dim, x, w_ref, v_ref):
    """Shared body: 3-layer MLP + LayerNorm on an (M, 128) activation slab."""
    v = v_ref[...]                        # (8, 128) packed vector slab
    b1, b2, b3 = v[0:1], v[1:2], v[2:3]
    gamma, beta = v[3:4], v[4:5]

    # MLP: Linear -> ReLU -> Linear -> ReLU -> Linear.  Zero padding of the
    # weight/bias slabs keeps padded lanes exactly zero through every stage.
    h1 = jnp.maximum(
        jnp.dot(x, w_ref[0], preferred_element_type=jnp.float32) + b1, 0.0)
    h2 = jnp.maximum(
        jnp.dot(h1, w_ref[1], preferred_element_type=jnp.float32) + b2, 0.0)
    h3 = jnp.dot(h2, w_ref[2], preferred_element_type=jnp.float32) + b3

    # Two-pass LayerNorm over the real proj_dim lanes.  Padded lanes of h3
    # are zero, so the raw sum is already correct; the centered values are
    # re-masked so padded lanes do not pollute the variance.
    inv_p = 1.0 / float(proj_dim)
    mean = jnp.sum(h3, axis=-1, keepdims=True) * inv_p
    lane = lax.broadcasted_iota(jnp.int32, h3.shape, 1)
    centered = jnp.where(lane < proj_dim, h3 - mean, 0.0)
    var = jnp.sum(centered * centered, axis=-1, keepdims=True) * inv_p
    normed = centered * lax.rsqrt(var + _EPS)
    # gamma/beta are zero on padded lanes -> padded output lanes stay 0.
    return normed * gamma + beta


def _block_kernel(proj_dim, tok_ref, w_ref, v_ref, o_ref):
    """Grid-free kernel: encode the whole (M, 128) token slab in one shot."""
    o_ref[...] = _mlp_layernorm(proj_dim, tok_ref[...], w_ref, v_ref)


def _select_kernel(proj_dim, sel_ref, tok_ref, w_ref, v_ref, o_ref):
    """Traced-flag kernel: the modality select already happened in index_map."""
    del sel_ref
    o_ref[...] = _mlp_layernorm(proj_dim, tok_ref[...], w_ref, v_ref)


def _cost(m_rows):
    flops = 3 * 2 * m_rows * LANES * LANES + 12 * m_rows * LANES
    bytes_accessed = 4 * (2 * m_rows * LANES + 3 * LANES * LANES + 8 * LANES)
    return pl.CostEstimate(flops=flops, transcendentals=m_rows,
                           bytes_accessed=bytes_accessed)


def _encode_block(tok_block, w_slab, v_slab, proj_dim):
    """Single-block, grid-free encode of an (M, 128) padded token slab."""
    m_rows = tok_block.shape[0]
    return pl.pallas_call(
        functools.partial(_block_kernel, proj_dim),
        out_shape=jax.ShapeDtypeStruct((m_rows, LANES), jnp.float32),
        cost_estimate=_cost(m_rows),
    )(tok_block, w_slab, v_slab)


def _encode_selected(sel, tokens_stacked, w_slab, v_slab, proj_dim, s_pad):
    """Traced-flag path: DMA only the selected (s_pad, 128) token block."""
    return pl.pallas_call(
        functools.partial(_select_kernel, proj_dim),
        out_shape=jax.ShapeDtypeStruct((s_pad, LANES), jnp.float32),
        grid_spec=pltpu.PrefetchScalarGridSpec(
            num_scalar_prefetch=1,
            grid=(1,),
            in_specs=[
                # Data-dependent modality select: block 0 = text, 1 = image.
                pl.BlockSpec((s_pad, LANES), lambda i, sel: (sel[0], 0)),
                # Weight / vector slabs stay resident (constant block index).
                pl.BlockSpec((3, LANES, LANES), lambda i, sel: (0, 0, 0)),
                pl.BlockSpec((8, LANES), lambda i, sel: (0, 0)),
            ],
            out_specs=pl.BlockSpec((s_pad, LANES), lambda i, sel: (0, 0)),
        ),
        compiler_params=pltpu.CompilerParams(
            dimension_semantics=("arbitrary",)),
        cost_estimate=_cost(s_pad),
    )(sel, tokens_stacked, w_slab, v_slab)


# ------------------------------ packing (one-time) ---------------------------
def _pack_params(params):
    """Pack weights/biases/LayerNorm affine into two lane-dense f32 slabs."""
    D = params["w1"].shape[0]
    P = params["w3"].shape[1]

    w = jnp.zeros((3, LANES, LANES), jnp.float32)
    w = w.at[0, :D, :HID1].set(params["w1"])
    w = w.at[1, :HID1, :HID2].set(params["w2"])
    w = w.at[2, :HID2, :P].set(params["w3"])

    v = jnp.zeros((8, LANES), jnp.float32)
    v = v.at[0, :HID1].set(params["b1"].reshape(-1))
    v = v.at[1, :HID2].set(params["b2"].reshape(-1))
    v = v.at[2, :P].set(params["b3"].reshape(-1))
    v = v.at[3, :P].set(params["gamma"].reshape(-1))
    v = v.at[4, :P].set(params["beta"].reshape(-1))
    return w, v


def _pad_token(token, s_pad):
    S, D = token.shape
    out = jnp.zeros((s_pad, LANES), jnp.float32)
    return out.at[:S, :D].set(token.astype(jnp.float32))


# ------------------------------ module glue ---------------------------------
class ModalityTokenEncoderTPU:
    """JAX/Pallas port of the PyTorch ModalityTokenEncoder.

    All slab packing (padded weights, biases, LayerNorm affine, padded
    tokens) happens exactly once here, never inside forward().
    """

    def __init__(self, params, text_token, image_token):
        S, D = text_token.shape
        assert image_token.shape == (S, D)
        self.token_size = S
        self.proj_dim = int(params["w3"].shape[1])
        assert D <= LANES and self.proj_dim <= LANES, \
            "padding scheme assumes feature dims <= 128"
        # TODO(synk): tile the matmuls if token_dim / projection_dim exceed 128.
        self._s_pad = -(-S // _SUBLANE) * _SUBLANE

        self.w_slab, self.v_slab = _pack_params(params)
        self.text_block = _pad_token(text_token, self._s_pad)     # (S_pad, 128)
        self.image_block = _pad_token(image_token, self._s_pad)   # (S_pad, 128)
        # Stacked layout for the traced-flag path: block 0 = text, 1 = image.
        self.tokens_stacked = jnp.concatenate(
            [self.text_block, self.image_block], axis=0)          # (2*S_pad, 128)

    def __call__(self, modality_type):
        return self.forward(modality_type)

    def forward(self, modality_type):
        if isinstance(modality_type, str):
            # Static modality: select in Python, plain single-block kernel,
            # no scalar prefetch / grid machinery.
            tok = self.image_block if modality_type == "image" else self.text_block
            out = _encode_block(tok, self.w_slab, self.v_slab, self.proj_dim)
        else:
            # Traced/dynamic flag: in-kernel select via scalar prefetch.
            # Normalize so any nonzero value means "image" (never OOB).
            sel = (jnp.asarray(modality_type) != 0).astype(jnp.int32).reshape((1,))
            out = _encode_selected(sel, self.tokens_stacked, self.w_slab,
                                   self.v_slab, self.proj_dim, self._s_pad)
        return out[: self.token_size, : self.proj_dim]

    def encode_both(self):
        """Both modalities in ONE grid-free launch (M = 2*S_pad rows)."""
        out = _encode_block(self.tokens_stacked, self.w_slab, self.v_slab,
                            self.proj_dim)
        s, sp, p = self.token_size, self._s_pad, self.proj_dim
        return out[:s, :p], out[sp: sp + s, :p]


def init_params(key, token_size, token_dim, projection_dim):
    """Deterministic parameter init mirroring the PyTorch __init__ shapes."""
    ks = jax.random.split(key, 8)

    # token std ~ U(0.1, 0.6), like torch.rand(1)*0.5 + 0.1
    text_std = jax.random.uniform(ks[0], ()) * 0.5 + 0.1
    image_std = jax.random.uniform(ks[1], ()) * 0.5 + 0.1
    text_token = jax.random.normal(ks[2], (token_size, token_dim)) * text_std
    image_token = jax.random.normal(ks[3], (token_size, token_dim)) * image_std

    def linear(k, fan_in, fan_out):
        kw, kb = jax.random.split(k)
        bound = 1.0 / jnp.sqrt(fan_in)
        w = jax.random.uniform(kw, (fan_in, fan_out), minval=-bound, maxval=bound)
        b = jax.random.uniform(kb, (1, fan_out), minval=-bound, maxval=bound)
        return w.astype(jnp.float32), b.astype(jnp.float32)

    w1, b1 = linear(ks[4], token_dim, HID1)
    w2, b2 = linear(ks[5], HID1, HID2)
    w3, b3 = linear(ks[6], HID2, projection_dim)

    params = dict(
        w1=w1, b1=b1, w2=w2, b2=b2, w3=w3, b3=b3,
        gamma=jnp.ones((1, projection_dim), jnp.float32),
        beta=jnp.zeros((1, projection_dim), jnp.float32),
    )
    return params, text_token.astype(jnp.float32), image_token.astype(jnp.float32)


# ------------------------------ reference -----------------------------------
def _ref_forward(token, p):
    h = jnp.maximum(token @ p["w1"] + p["b1"], 0.0)
    h = jnp.maximum(h @ p["w2"] + p["b2"], 0.0)
    h = h @ p["w3"] + p["b3"]
    mu = jnp.mean(h, -1, keepdims=True)
    var = jnp.mean((h - mu) ** 2, -1, keepdims=True)
    return (h - mu) / jnp.sqrt(var + _EPS) * p["gamma"] + p["beta"]


if __name__ == "__main__":
    TOKEN_SIZE = 8          # token_size
    TOKEN_DIM = 32          # token_dim
    PROJECTION_DIM = 64     # projection_dim

    key = jax.random.PRNGKey(0)
    params, text_token, image_token = init_params(
        key, TOKEN_SIZE, TOKEN_DIM, PROJECTION_DIM)

    # Slab packing happens exactly once, here.
    encoder = ModalityTokenEncoderTPU(params, text_token, image_token)

    # Batched path: both modalities in one grid-free kernel launch.
    out_text, out_image = encoder.encode_both()
    jax.block_until_ready((out_text, out_image))

    # Static-string modality path (no scalar prefetch).
    out_image_static = encoder("image")
    out_text_static = encoder("text")
    jax.block_until_ready((out_image_static, out_text_static))

    # Traced-flag path (in-kernel select; any nonzero flag == image).
    out_image_traced = encoder(jnp.int32(1))
    out_text_traced = encoder(jnp.int32(0))
    out_image_traced2 = encoder(jnp.int32(7))   # normalized -> image, no OOB
    jax.block_until_ready((out_image_traced, out_text_traced, out_image_traced2))

    ref_text = _ref_forward(text_token, params)
    ref_image = _ref_forward(image_token, params)

    assert out_text.shape == (TOKEN_SIZE, PROJECTION_DIM)
    assert out_image.shape == (TOKEN_SIZE, PROJECTION_DIM)
    assert jnp.allclose(out_text, ref_text, atol=1e-4, rtol=1e-4)
    assert jnp.allclose(out_image, ref_image, atol=1e-4, rtol=1e-4)
    assert jnp.allclose(out_text_static, ref_text, atol=1e-4, rtol=1e-4)
    assert jnp.allclose(out_image_static, ref_image, atol=1e-4, rtol=1e-4)
    assert jnp.allclose(out_text_traced, ref_text, atol=1e-4, rtol=1e-4)
    assert jnp.allclose(out_image_traced, ref_image, atol=1e-4, rtol=1e-4)
    assert jnp.allclose(out_image_traced2, ref_image, atol=1e-4, rtol=1e-4)

    print("KERNEL_OK")
</pallas_src>

<mosaic_0001>
module attributes {stable_mosaic.version = 11 : i64} {
  func.func @_block_kernel(%arg0: memref<16x128xf32, #tpu.memory_space<vmem>>, %arg1: memref<3x128x128xf32, #tpu.memory_space<vmem>>, %arg2: memref<8x128xf32, #tpu.memory_space<vmem>>, %arg3: memref<16x128xf32, #tpu.memory_space<vmem>>) attributes {dimension_semantics = [], scalar_prefetch = 0 : i64, scratch_operands = 0 : i64, tpu.core_type = #tpu.core_type<tc>} {
    %c0 = arith.constant 0 : index
    %c0_0 = arith.constant 0 : index
    %0 = vector.load %arg0[%c0, %c0_0] : memref<16x128xf32, #tpu.memory_space<vmem>>, vector<16x128xf32>
    %c0_1 = arith.constant 0 : index
    %c0_2 = arith.constant 0 : index
    %1 = vector.load %arg2[%c0_1, %c0_2] : memref<8x128xf32, #tpu.memory_space<vmem>>, vector<8x128xf32>
    %2 = vector.extract_strided_slice %1 {offsets = [0, 0], sizes = [1, 128], strides = [1, 1]} : vector<8x128xf32> to vector<1x128xf32>
    %3 = vector.extract_strided_slice %1 {offsets = [1, 0], sizes = [1, 128], strides = [1, 1]} : vector<8x128xf32> to vector<1x128xf32>
    %4 = vector.extract_strided_slice %1 {offsets = [2, 0], sizes = [1, 128], strides = [1, 1]} : vector<8x128xf32> to vector<1x128xf32>
    %5 = vector.extract_strided_slice %1 {offsets = [3, 0], sizes = [1, 128], strides = [1, 1]} : vector<8x128xf32> to vector<1x128xf32>
    %6 = vector.extract_strided_slice %1 {offsets = [4, 0], sizes = [1, 128], strides = [1, 1]} : vector<8x128xf32> to vector<1x128xf32>
    %c0_3 = arith.constant 0 : index
    %c0_4 = arith.constant 0 : index
    %c0_5 = arith.constant 0 : index
    %7 = vector.load %arg1[%c0_3, %c0_4, %c0_5] : memref<3x128x128xf32, #tpu.memory_space<vmem>>, vector<1x128x128xf32>
    %8 = vector.shape_cast %7 : vector<1x128x128xf32> to vector<128x128xf32>
    %cst = arith.constant dense<0.000000e+00> : vector<16x128xf32>
    %9 = tpu.matmul %0, %8, %cst {dimension_numbers = #tpu.dot_dimension_numbers<[1], [0], [0], [1], [0, 0, 1, 1], [], []>} : vector<16x128xf32>, vector<128x128xf32>, vector<16x128xf32> -> vector<16x128xf32>
    %10 = vector.broadcast %2 : vector<1x128xf32> to vector<16x128xf32>
    %11 = arith.addf %9, %10 : vector<16x128xf32>
    %cst_6 = arith.constant 0.000000e+00 : f32
    %12 = vector.broadcast %cst_6 : f32 to vector<16x128xf32>
    %13 = arith.maximumf %11, %12 : vector<16x128xf32>
    %c1 = arith.constant 1 : index
    %c0_7 = arith.constant 0 : index
    %c0_8 = arith.constant 0 : index
    %14 = vector.load %arg1[%c1, %c0_7, %c0_8] : memref<3x128x128xf32, #tpu.memory_space<vmem>>, vector<1x128x128xf32>
    %15 = vector.shape_cast %14 : vector<1x128x128xf32> to vector<128x128xf32>
    %cst_9 = arith.constant dense<0.000000e+00> : vector<16x128xf32>
    %16 = tpu.matmul %13, %15, %cst_9 {dimension_numbers = #tpu.dot_dimension_numbers<[1], [0], [0], [1], [0, 0, 1, 1], [], []>} : vector<16x128xf32>, vector<128x128xf32>, vector<16x128xf32> -> vector<16x128xf32>
    %17 = vector.broadcast %3 : vector<1x128xf32> to vector<16x128xf32>
    %18 = arith.addf %16, %17 : vector<16x128xf32>
    %cst_10 = arith.constant 0.000000e+00 : f32
    %19 = vector.broadcast %cst_10 : f32 to vector<16x128xf32>
    %20 = arith.maximumf %18, %19 : vector<16x128xf32>
    %c2 = arith.constant 2 : index
    %c0_11 = arith.constant 0 : index
    %c0_12 = arith.constant 0 : index
    %21 = vector.load %arg1[%c2, %c0_11, %c0_12] : memref<3x128x128xf32, #tpu.memory_space<vmem>>, vector<1x128x128xf32>
    %22 = vector.shape_cast %21 : vector<1x128x128xf32> to vector<128x128xf32>
    %cst_13 = arith.constant dense<0.000000e+00> : vector<16x128xf32>
    %23 = tpu.matmul %20, %22, %cst_13 {dimension_numbers = #tpu.dot_dimension_numbers<[1], [0], [0], [1], [0, 0, 1, 1], [], []>} : vector<16x128xf32>, vector<128x128xf32>, vector<16x128xf32> -> vector<16x128xf32>
    %24 = vector.broadcast %4 : vector<1x128xf32> to vector<16x128xf32>
    %25 = arith.addf %23, %24 : vector<16x128xf32>
    %cst_14 = arith.constant dense<0.000000e+00> : vector<16xf32>
    %26 = vector.multi_reduction <add>, %25, %cst_14 [1] : vector<16x128xf32> to vector<16xf32>
    %27 = vector.shape_cast %26 : vector<16xf32> to vector<16x1xf32>
    %cst_15 = arith.constant 1.562500e-02 : f32
    %28 = vector.broadcast %cst_15 : f32 to vector<16x1xf32>
    %29 = arith.mulf %27, %28 : vector<16x1xf32>
    %30 = tpu.iota {dimensions = array<i32: 1>} : vector<16x128xi32>
    %c64_i32 = arith.constant 64 : i32
    %31 = vector.broadcast %c64_i32 : i32 to vector<16x128xi32>
    %32 = arith.cmpi slt, %30, %31 : vector<16x128xi32>
    %33 = vector.broadcast %29 : vector<16x1xf32> to vector<16x128xf32>
    %34 = arith.subf %25, %33 : vector<16x128xf32>
    %cst_16 = arith.constant 0.000000e+00 : f32
    %35 = vector.broadcast %cst_16 : f32 to vector<16x128xf32>
    %36 = arith.select %32, %34, %35 : vector<16x128xi1>, vector<16x128xf32>
    %37 = arith.mulf %36, %36 : vector<16x128xf32>
    %cst_17 = arith.constant dense<0.000000e+00> : vector<16xf32>
    %38 = vector.multi_reduction <add>, %37, %cst_17 [1] : vector<16x128xf32> to vector<16xf32>
    %39 = vector.shape_cast %38 : vector<16xf32> to vector<16x1xf32>
    %cst_18 = arith.constant 1.562500e-02 : f32
    %40 = vector.broadcast %cst_18 : f32 to vector<16x1xf32>
    %41 = arith.mulf %39, %40 : vector<16x1xf32>
    %cst_19 = arith.constant 9.99999974E-6 : f32
    %42 = vector.broadcast %cst_19 : f32 to vector<16x1xf32>
    %43 = arith.addf %41, %42 : vector<16x1xf32>
    %44 = math.rsqrt %43 : vector<16x1xf32>
    %45 = vector.broadcast %44 : vector<16x1xf32> to vector<16x128xf32>
    %46 = arith.mulf %36, %45 : vector<16x128xf32>
    %47 = vector.broadcast %5 : vector<1x128xf32> to vector<16x128xf32>
    %48 = arith.mulf %46, %47 : vector<16x128xf32>
    %49 = vector.broadcast %6 : vector<1x128xf32> to vector<16x128xf32>
    %50 = arith.addf %48, %49 : vector<16x128xf32>
    %c0_20 = arith.constant 0 : index
    %c0_21 = arith.constant 0 : index
    %51 = vector.load %arg3[%c0_20, %c0_21] : memref<16x128xf32, #tpu.memory_space<vmem>>, vector<16x128xf32>
    tpu.vector_store %arg3[%c0_20, %c0_21], %50 {strides = array<i32>} : memref<16x128xf32, #tpu.memory_space<vmem>>, vector<16x128xf32>,
    return
  }
}

</mosaic_0001>

<llo_original>
// kernel: tpu_custom_call.1
$region0: #{tpu_custom_call.1}
  #allocation0 [shape = 'u32[]', space=smem, size = 0x4, offset = 0x4, fixed_abs, tag = 'smem constant byte address 0x4 - core index']
  #allocation1 [shape = 'u32[144,128]{1,0:T(1,128)}', space=vmem, size = 0x12000, scoped, tag = 'internal scratch']
  %s0 = inlined_call_operand.hbm [shape: f32[16,128], index: 0, kind: input, shape index: {}]
  %s1 = inlined_call_operand.hbm [shape: f32[3,128,128], index: 1, kind: input, shape index: {}]
  %s2 = inlined_call_operand.hbm [shape: f32[8,128], index: 2, kind: input, shape index: {}]
  %s3 = inlined_call_operand.hbm [shape: f32[16,128], index: 3, kind: output, shape index: {}]
  %s4 = sld [smem:[#allocation0]]
  $region34: #{tpu_custom_call.1} parent=0
    _
  %s6 = ssub.s32 1, %s4
  %s7 = scalar_select 0, %s6, %s4
  $region1: #{tpu_custom_call.1} parent=0
    #allocation2 [shape = 'u8[8192]{0}', space=vmem, size = 0x2000, scoped, tag = 'input window, operand 0, single buffered']
    #allocation3 [shape = 's32[1]{0}', space=sflag, size = 0x4, scoped, tag = 'scoped memory for tpu_custom_call.1']
    #allocation4 [shape = 's32[1]{0}', space=sflag, size = 0x4, scoped, tag = 'scoped memory for tpu_custom_call.1']
    #allocation5 [shape = 'u8[196608]{0}', space=vmem, size = 0x30000, scoped, tag = 'input window, operand 1, single buffered']
    #allocation6 [shape = 's32[1]{0}', space=sflag, size = 0x4, scoped, tag = 'scoped memory for tpu_custom_call.1']
    #allocation7 [shape = 'u8[4096]{0}', space=vmem, size = 0x1000, scoped, tag = 'input window, operand 2, single buffered']
    #allocation8 [shape = 'u8[8192]{0}', space=vmem, size = 0x2000, scoped, tag = 'output window, operand 0, single buffered']
    %8 = vsyncpa [#allocation3], 0
    %9 = vsyncpa [#allocation6], 0
    %10 = vsyncpa [#allocation4], 0
    // Predicated region
    $region2: #{tpu_custom_call.1} parent=1 // pred_check
      _
    $region3: #{tpu_custom_call.1} parent=1 // pred_check_branch
      %12 = sbr.rel (0) target = $region5
    $region4: #{tpu_custom_call.1} parent=1 // pred_region
      %s14 = ssub.s32 256, 256
      %15 = vsyncadd [#allocation3], %s14
      %s16 = sshll.u32 [#allocation2], 4
      %s17 = int_to_ptr.vmem [resolvable:$true] %s16
      %22 = dma.hbm_to_vmem [thread:$0]  %s0, 256, %s17, [#allocation3], 128, 128, 8
    $region5: #{tpu_custom_call.1} parent=1 // pred_fallthru
      _
    // Predicated region
    $region6: #{tpu_custom_call.1} parent=1 // pred_check
      _
    $region7: #{tpu_custom_call.1} parent=1 // pred_check_branch
      %24 = sbr.rel (0) target = $region9
    $region8: #{tpu_custom_call.1} parent=1 // pred_region
      %s26 = ssub.s32 6144, 6144
      %27 = vsyncadd [#allocation6], %s26
      %s28 = sshll.u32 [#allocation5], 4
      %s29 = int_to_ptr.vmem [resolvable:$true] %s28
      %34 = dma.hbm_to_vmem [thread:$0]  %s1, 6144, %s29, [#allocation6], 128, 128, 8
    $region9: #{tpu_custom_call.1} parent=1 // pred_fallthru
      _
    // Predicated region
    $region10: #{tpu_custom_call.1} parent=1 // pred_check
      _
    $region11: #{tpu_custom_call.1} parent=1 // pred_check_branch
      %36 = sbr.rel (0) target = $region13
    $region12: #{tpu_custom_call.1} parent=1 // pred_region
      %s38 = ssub.s32 128, 128
      %39 = vsyncadd [#allocation6], %s38
      %s41 = sshll.u32 [#allocation7], 4
      %s42 = int_to_ptr.vmem [resolvable:$true] %s41
      %44 = dma.hbm_to_vmem [thread:$0]  %s2, 128, %s42, [#allocation6]
    $region13: #{tpu_custom_call.1} parent=1 // pred_fallthru
      _
    // Predicated region
    $region14: #{tpu_custom_call.1} parent=1 // pred_check
      _
    $region15: #{tpu_custom_call.1} parent=1 // pred_check_branch
      %46 = sbr.rel (0) target = $region17
    $region16: #{tpu_custom_call.1} parent=1 // pred_region
      %47 = dma.done [#allocation3], 256
    $region17: #{tpu_custom_call.1} parent=1 // pred_fallthru
      _
    // Predicated region
    $region18: #{tpu_custom_call.1} parent=1 // pred_check
      _
    $region19: #{tpu_custom_call.1} parent=1 // pred_check_branch
      %49 = sbr.rel (0) target = $region21
    $region20: #{tpu_custom_call.1} parent=1 // pred_region
      %50 = dma.done [#allocation6], 6144
    $region21: #{tpu_custom_call.1} parent=1 // pred_fallthru
      _
    // Predicated region
    $region22: #{tpu_custom_call.1} parent=1 // pred_check
      _
    $region23: #{tpu_custom_call.1} parent=1 // pred_check_branch
      %52 = sbr.rel (0) target = $region25
    $region24: #{tpu_custom_call.1} parent=1 // pred_region
      %53 = dma.done [#allocation6], 128
    $region25: #{tpu_custom_call.1} parent=1 // pred_fallthru
      _
    %v54 = vld [vmem:[#allocation2] sm:$0xff]
    %v55 = vld [vmem:[#allocation2 + $0x8] sm:$0xff]
    %v56 = vld [vmem:[#allocation7] sm:$0xff]
    %v57 = vld [vmem:[#allocation5] sm:$0xff]
    %v58 = vld [vmem:[#allocation5 + $0x8] sm:$0xff]
    %v59 = vld [vmem:[#allocation5 + $0x10] sm:$0xff]
    %v60 = vld [vmem:[#allocation5 + $0x18] sm:$0xff]
    %v61 = vld [vmem:[#allocation5 + $0x20] sm:$0xff]
    %v62 = vld [vmem:[#allocation5 + $0x28] sm:$0xff]
    %v63 = vld [vmem:[#allocation5 + $0x30] sm:$0xff]
    %v64 = vld [vmem:[#allocation5 + $0x38] sm:$0xff]
    %v65 = vld [vmem:[#allocation5 + $0x40] sm:$0xff]
    %v66 = vld [vmem:[#allocation5 + $0x48] sm:$0xff]
    %v67 = vld [vmem:[#allocation5 + $0x50] sm:$0xff]
    %v68 = vld [vmem:[#allocation5 + $0x58] sm:$0xff]
    %v69 = vld [vmem:[#allocation5 + $0x60] sm:$0xff]
    %v70 = vld [vmem:[#allocation5 + $0x68] sm:$0xff]
    %v71 = vld [vmem:[#allocation5 + $0x70] sm:$0xff]
    %v72 = vld [vmem:[#allocation5 + $0x78] sm:$0xff]
    %v73 = vlaneseq
    %v74 = vshrl.u32 %v73, 7
    %v75 = vsub.s32 0, %v74
    %v76 = vrot.slane %v56, %v75
    %77 = vmatprep.subr.mxu0 0.0
    %78 = vmatpush1.msra.mxu0 %v72
    %79 = vmatprep.subr.mxu0 0.0
    %80 = vmatpush1.msra.mxu0 %v71
    %81 = vmatprep.subr.mxu0 0.0
    %82 = vmatpush1.msra.mxu0 %v70
    %83 = vmatprep.subr.mxu0 0.0
    %84 = vmatpush1.msra.mxu0 %v69
    %85 = vmatprep.subr.mxu0 0.0
    %86 = vmatpush1.msra.mxu0 %v68
    %87 = vmatprep.subr.mxu0 0.0
    %88 = vmatpush1.msra.mxu0 %v67
    %89 = vmatprep.subr.mxu0 0.0
    %90 = vmatpush1.msra.mxu0 %v66
    %91 = vmatprep.subr.mxu0 0.0
    %92 = vmatpush1.msra.mxu0 %v65
    %93 = vmatprep.subr.mxu0 0.0
    %94 = vmatpush1.msra.mxu0 %v64
    %95 = vmatprep.subr.mxu0 0.0
    %96 = vmatpush1.msra.mxu0 %v63
    %97 = vmatprep.subr.mxu0 0.0
    %98 = vmatpush1.msra.mxu0 %v62
    %99 = vmatprep.subr.mxu0 0.0
    %100 = vmatpush1.msra.mxu0 %v61
    %101 = vmatprep.subr.mxu0 0.0
    %102 = vmatpush1.msra.mxu0 %v60
    %103 = vmatprep.subr.mxu0 0.0
    %104 = vmatpush1.msra.mxu0 %v59
    %105 = vmatprep.subr.mxu0 0.0
    %106 = vmatpush1.msra.mxu0 %v58
    %107 = vmatprep.subr.mxu0 0.0
    %108 = vmatpush1.msra.mxu0 %v57
    %109 = vmatprep.subr.mxu0 0.0
    %110 = vmatpush2.msra.mxu0 0.0
    %111 = vmatprep.subr.mxu0 0.0
    %112 = vmatpush2.msra.mxu0 0.0
    %113 = vmatprep.subr.mxu0 0.0
    %114 = vmatpush2.msra.mxu0 0.0
    %115 = vmatprep.subr.mxu0 0.0
    %116 = vmatpush2.msra.mxu0 0.0
    %117 = vmatprep.subr.mxu0 0.0
    %118 = vmatpush2.msra.mxu0 0.0
    %119 = vmatprep.subr.mxu0 0.0
    %120 = vmatpush2.msra.mxu0 0.0
    %121 = vmatprep.subr.mxu0 0.0
    %122 = vmatpush2.msra.mxu0 0.0
    %123 = vmatprep.subr.mxu0 0.0
    %124 = vmatpush2.msra.mxu0 0.0
    %125 = vmatprep.subr.mxu0 0.0
    %126 = vmatpush2.msra.mxu0 0.0
    %127 = vmatprep.subr.mxu0 0.0
    %128 = vmatpush2.msra.mxu0 0.0
    %129 = vmatprep.subr.mxu0 0.0
    %130 = vmatpush2.msra.mxu0 0.0
    %131 = vmatprep.subr.mxu0 0.0
    %132 = vmatpush2.msra.mxu0 0.0
    %133 = vmatprep.subr.mxu0 0.0
    %134 = vmatpush2.msra.mxu0 0.0
    %135 = vmatprep.subr.mxu0 0.0
    %136 = vmatpush2.msra.mxu0 0.0
    %137 = vmatprep.subr.mxu0 0.0
    %138 = vmatpush2.msra.mxu0 0.0
    %139 = vmatprep.subr.mxu0 0.0
    %140 = vmatpush2.msra.mxu0 0.0
    %141 = vmatprep.mubr.f32.mxu0 0.0
    %142 = vmatmul.mubr.f32.gmra.mxu0 %v54
    %v143 = vpop.f32.mrf.mxu0
    %v144 = vadd.f32 %v76, %v143
    %v145 = vpop.f32.mrf.mxu0
    %146 = vmatprep.mubr.f32.mxu0 0.0
    %147 = vmatmul.mubr.f32.gmra.mxu0 %v55
    %v148 = vpop.f32.mrf.mxu0
    %v149 = vadd.f32 %v76, %v148
    %v150 = vpop.f32.mrf.mxu0
    %151 = vdwg.mxu0
    %v152 = vmax.f32 %v144, 0.0
    %v153 = vmax.f32 %v149, 0.0
    %s154 = scalar_lea.vmem [#allocation5], 128
    %v155 = vld [vmem:[%s154] sm:$0xff]
    %v156 = vld [vmem:[%s154 + $0x8] sm:$0xff]
    %v157 = vld [vmem:[%s154 + $0x10] sm:$0xff]
    %v158 = vld [vmem:[%s154 + $0x18] sm:$0xff]
    %v159 = vld [vmem:[%s154 + $0x20] sm:$0xff]
    %v160 = vld [vmem:[%s154 + $0x28] sm:$0xff]
    %v161 = vld [vmem:[%s154 + $0x30] sm:$0xff]
    %v162 = vld [vmem:[%s154 + $0x38] sm:$0xff]
    %v163 = vld [vmem:[%s154 + $0x40] sm:$0xff]
    %v164 = vld [vmem:[%s154 + $0x48] sm:$0xff]
    %v165 = vld [vmem:[%s154 + $0x50] sm:$0xff]
    %v166 = vld [vmem:[%s154 + $0x58] sm:$0xff]
    %v167 = vld [vmem:[%s154 + $0x60] sm:$0xff]
    %v168 = vld [vmem:[%s154 + $0x68] sm:$0xff]
    %v169 = vld [vmem:[%s154 + $0x70] sm:$0xff]
    %v170 = vld [vmem:[%s154 + $0x78] sm:$0xff]
    %v171 = vlaneseq
    %v172 = vshrl.u32 %v171, 7
    %v173 = vsub.s32 1, %v172
    %v174 = vrot.slane %v56, %v173
    %175 = vmatprep.subr.mxu0 0.0
    %176 = vmatpush1.msra.mxu0 %v170
    %177 = vmatprep.subr.mxu0 0.0
    %178 = vmatpush1.msra.mxu0 %v169
    %179 = vmatprep.subr.mxu0 0.0
    %180 = vmatpush1.msra.mxu0 %v168
    %181 = vmatprep.subr.mxu0 0.0
    %182 = vmatpush1.msra.mxu0 %v167
    %183 = vmatprep.subr.mxu0 0.0
    %184 = vmatpush1.msra.mxu0 %v166
    %185 = vmatprep.subr.mxu0 0.0
    %186 = vmatpush1.msra.mxu0 %v165
    %187 = vmatprep.subr.mxu0 0.0
    %188 = vmatpush1.msra.mxu0 %v164
    %189 = vmatprep.subr.mxu0 0.0
    %190 = vmatpush1.msra.mxu0 %v163
    %191 = vmatprep.subr.mxu0 0.0
    %192 = vmatpush1.msra.mxu0 %v162
    %193 = vmatprep.subr.mxu0 0.0
    %194 = vmatpush1.msra.mxu0 %v161
    %195 = vmatprep.subr.mxu0 0.0
    %196 = vmatpush1.msra.mxu0 %v160
    %197 = vmatprep.subr.mxu0 0.0
    %198 = vmatpush1.msra.mxu0 %v159
    %199 = vmatprep.subr.mxu0 0.0
    %200 = vmatpush1.msra.mxu0 %v158
    %201 = vmatprep.subr.mxu0 0.0
    %202 = vmatpush1.msra.mxu0 %v157
    %203 = vmatprep.subr.mxu0 0.0
    %204 = vmatpush1.msra.mxu0 %v156
    %205 = vmatprep.subr.mxu0 0.0
    %206 = vmatpush1.msra.mxu0 %v155
    %207 = vmatprep.subr.mxu0 0.0
    %208 = vmatpush2.msra.mxu0 0.0
    %209 = vmatprep.subr.mxu0 0.0
    %210 = vmatpush2.msra.mxu0 0.0
    %211 = vmatprep.subr.mxu0 0.0
    %212 = vmatpush2.msra.mxu0 0.0
    %213 = vmatprep.subr.mxu0 0.0
    %214 = vmatpush2.msra.mxu0 0.0
    %215 = vmatprep.subr.mxu0 0.0
    %216 = vmatpush2.msra.mxu0 0.0
    %217 = vmatprep.subr.mxu0 0.0
    %218 = vmatpush2.msra.mxu0 0.0
    %219 = vmatprep.subr.mxu0 0.0
    %220 = vmatpush2.msra.mxu0 0.0
    %221 = vmatprep.subr.mxu0 0.0
    %222 = vmatpush2.msra.mxu0 0.0
    %223 = vmatprep.subr.mxu0 0.0
    %224 = vmatpush2.msra.mxu0 0.0
    %225 = vmatprep.subr.mxu0 0.0
    %226 = vmatpush2.msra.mxu0 0.0
    %227 = vmatprep.subr.mxu0 0.0
    %228 = vmatpush2.msra.mxu0 0.0
    %229 = vmatprep.subr.mxu0 0.0
    %230 = vmatpush2.msra.mxu0 0.0
    %231 = vmatprep.subr.mxu0 0.0
    %232 = vmatpush2.msra.mxu0 0.0
    %233 = vmatprep.subr.mxu0 0.0
    %234 = vmatpush2.msra.mxu0 0.0
    %235 = vmatprep.subr.mxu0 0.0
    %236 = vmatpush2.msra.mxu0 0.0
    %237 = vmatprep.subr.mxu0 0.0
    %238 = vmatpush2.msra.mxu0 0.0
    %239 = vmatprep.mubr.f32.mxu0 0.0
    %240 = vmatmul.mubr.f32.gmra.mxu0 %v152
    %v241 = vpop.f32.mrf.mxu0
    %v242 = vadd.f32 %v174, %v241
    %v243 = vpop.f32.mrf.mxu0
    %244 = vmatprep.mubr.f32.mxu0 0.0
    %245 = vmatmul.mubr.f32.gmra.mxu0 %v153
    %v246 = vpop.f32.mrf.mxu0
    %v247 = vadd.f32 %v174, %v246
    %v248 = vpop.f32.mrf.mxu0
    %249 = vdwg.mxu0
    %v250 = vmax.f32 %v242, 0.0
    %v251 = vmax.f32 %v247, 0.0
    %s252 = scalar_lea.vmem [#allocation5], 256
    %v253 = vld [vmem:[%s252] sm:$0xff]
    %v254 = vld [vmem:[%s252 + $0x8] sm:$0xff]
    %v255 = vld [vmem:[%s252 + $0x10] sm:$0xff]
    %v256 = vld [vmem:[%s252 + $0x18] sm:$0xff]
    %v257 = vld [vmem:[%s252 + $0x20] sm:$0xff]
    %v258 = vld [vmem:[%s252 + $0x28] sm:$0xff]
    %v259 = vld [vmem:[%s252 + $0x30] sm:$0xff]
    %v260 = vld [vmem:[%s252 + $0x38] sm:$0xff]
    %v261 = vld [vmem:[%s252 + $0x40] sm:$0xff]
    %v262 = vld [vmem:[%s252 + $0x48] sm:$0xff]
    %v263 = vld [vmem:[%s252 + $0x50] sm:$0xff]
    %v264 = vld [vmem:[%s252 + $0x58] sm:$0xff]
    %v265 = vld [vmem:[%s252 + $0x60] sm:$0xff]
    %v266 = vld [vmem:[%s252 + $0x68] sm:$0xff]
    %v267 = vld [vmem:[%s252 + $0x70] sm:$0xff]
    %v268 = vld [vmem:[%s252 + $0x78] sm:$0xff]
    %v269 = vlaneseq
    %v270 = vshrl.u32 %v269, 7
    %v271 = vsub.s32 2, %v270
    %v272 = vrot.slane %v56, %v271
    %273 = vmatprep.subr.mxu0 0.0
    %274 = vmatpush1.msra.mxu0 %v268
    %275 = vmatprep.subr.mxu0 0.0
    %276 = vmatpush1.msra.mxu0 %v267
    %277 = vmatprep.subr.mxu0 0.0
    %278 = vmatpush1.msra.mxu0 %v266
    %279 = vmatprep.subr.mxu0 0.0
    %280 = vmatpush1.msra.mxu0 %v265
    %281 = vmatprep.subr.mxu0 0.0
    %282 = vmatpush1.msra.mxu0 %v264
    %283 = vmatprep.subr.mxu0 0.0
    %284 = vmatpush1.msra.mxu0 %v263
    %285 = vmatprep.subr.mxu0 0.0
    %286 = vmatpush1.msra.mxu0 %v262
    %287 = vmatprep.subr.mxu0 0.0
    %288 = vmatpush1.msra.mxu0 %v261
    %289 = vmatprep.subr.mxu0 0.0
    %290 = vmatpush1.msra.mxu0 %v260
    %291 = vmatprep.subr.mxu0 0.0
    %292 = vmatpush1.msra.mxu0 %v259
    %293 = vmatprep.subr.mxu0 0.0
    %294 = vmatpush1.msra.mxu0 %v258
    %295 = vmatprep.subr.mxu0 0.0
    %296 = vmatpush1.msra.mxu0 %v257
    %297 = vmatprep.subr.mxu0 0.0
    %298 = vmatpush1.msra.mxu0 %v256
    %299 = vmatprep.subr.mxu0 0.0
    %300 = vmatpush1.msra.mxu0 %v255
    %301 = vmatprep.subr.mxu0 0.0
    %302 = vmatpush1.msra.mxu0 %v254
    %303 = vmatprep.subr.mxu0 0.0
    %304 = vmatpush1.msra.mxu0 %v253
    %305 = vmatprep.subr.mxu0 0.0
    %306 = vmatpush2.msra.mxu0 0.0
    %307 = vmatprep.subr.mxu0 0.0
    %308 = vmatpush2.msra.mxu0 0.0
    %309 = vmatprep.subr.mxu0 0.0
    %310 = vmatpush2.msra.mxu0 0.0
    %311 = vmatprep.subr.mxu0 0.0
    %312 = vmatpush2.msra.mxu0 0.0
    %313 = vmatprep.subr.mxu0 0.0
    %314 = vmatpush2.msra.mxu0 0.0
    %315 = vmatprep.subr.mxu0 0.0
    %316 = vmatpush2.msra.mxu0 0.0
    %317 = vmatprep.subr.mxu0 0.0
    %318 = vmatpush2.msra.mxu0 0.0
    %319 = vmatprep.subr.mxu0 0.0
    %320 = vmatpush2.msra.mxu0 0.0
    %321 = vmatprep.subr.mxu0 0.0
    %322 = vmatpush2.msra.mxu0 0.0
    %323 = vmatprep.subr.mxu0 0.0
    %324 = vmatpush2.msra.mxu0 0.0
    %325 = vmatprep.subr.mxu0 0.0
    %326 = vmatpush2.msra.mxu0 0.0
    %327 = vmatprep.subr.mxu0 0.0
    %328 = vmatpush2.msra.mxu0 0.0
    %329 = vmatprep.subr.mxu0 0.0
    %330 = vmatpush2.msra.mxu0 0.0
    %331 = vmatprep.subr.mxu0 0.0
    %332 = vmatpush2.msra.mxu0 0.0
    %333 = vmatprep.subr.mxu0 0.0
    %334 = vmatpush2.msra.mxu0 0.0
    %335 = vmatprep.subr.mxu0 0.0
    %336 = vmatpush2.msra.mxu0 0.0
    %337 = vmatprep.mubr.f32.mxu0 0.0
    %338 = vmatmul.mubr.f32.gmra.mxu0 %v250
    %v339 = vpop.f32.mrf.mxu0
    %v340 = vadd.f32 %v272, %v339
    %v341 = vpop.f32.mrf.mxu0
    %342 = vmatprep.mubr.f32.mxu0 0.0
    %343 = vmatmul.mubr.f32.gmra.mxu0 %v251
    %v344 = vpop.f32.mrf.mxu0
    %v345 = vadd.f32 %v272, %v344
    %v346 = vpop.f32.mrf.mxu0
    %347 = vdwg.mxu0
    %348 = vadd.xlane.f32.xlu0 %v340
    %v349 = vpop.xlane.xlu0 %348
    %350 = vadd.xlane.f32.xlu0 %v345
    %v351 = vpop.xlane.xlu0 %350
    %v352 = vmul.f32 %v349, 0.015625
    %v353 = vmul.f32 %v351, 0.015625
    %v354 = vlaneseq
    %v355 = vand.u32 %v354, 127
    %vm356 = vcmp.lt.s32.totalorder %v355, 64
    %v357 = vsub.f32 %v340, %v352
    %v358 = vsub.f32 %v345, %v353
    %v359 = vsel %vm356, %v357, 0.0
    %v360 = vsel %vm356, %v358, 0.0
    %v361 = vmul.f32 %v359, %v359
    %v362 = vmul.f32 %v360, %v360
    %363 = vadd.xlane.f32.xlu0 %v361
    %v364 = vpop.xlane.xlu0 %363
    %365 = vadd.xlane.f32.xlu0 %v362
    %v366 = vpop.xlane.xlu0 %365
    %v367 = vmul.f32 %v364, 0.015625
    %v368 = vmul.f32 %v366, 0.015625
    %v369 = vadd.f32 %v367, 1e-05
    %v370 = vadd.f32 %v368, 1e-05
    %v371 = vrsqrt.pop %v369
    %v372 = vrsqrt.pop %v370
    %v373 = vmul.f32 %v359, %v371
    %v374 = vmul.f32 %v360, %v372
    %v375 = vlaneseq
    %v376 = vshrl.u32 %v375, 7
    %v377 = vsub.s32 3, %v376
    %v378 = vrot.slane %v56, %v377
    %v379 = vmul.f32 %v373, %v378
    %v380 = vmul.f32 %v374, %v378
    %v381 = vlaneseq
    %v382 = vshrl.u32 %v381, 7
    %v383 = vsub.s32 4, %v382
    %v384 = vrot.slane %v56, %v383
    %v385 = vadd.f32 %v379, %v384
    %v386 = vadd.f32 %v380, %v384
    %387 = vst [vmem:[#allocation8] sm:$0xff] %v385
    %388 = vst [vmem:[#allocation8 + $0x8] sm:$0xff] %v386
    // Predicated region
    $region26: #{tpu_custom_call.1} parent=1 // pred_check
      _
    $region27: #{tpu_custom_call.1} parent=1 // pred_check_branch
      %390 = sbr.rel (0) target = $region29
    $region28: #{tpu_custom_call.1} parent=1 // pred_region
      %s392 = ssub.s32 256, 256
      %393 = vsyncadd [#allocation4], %s392
      %s394 = sshll.u32 [#allocation8], 4
      %s395 = int_to_ptr.vmem [resolvable:$true] %s394
      %400 = dma.vmem_to_hbm [thread:$0]  %s395, 256, %s3, [#allocation4], 128, 128, 8
    $region29: #{tpu_custom_call.1} parent=1 // pred_fallthru
      _
    // Predicated region
    $region30: #{tpu_custom_call.1} parent=1 // pred_check
      _
    $region31: #{tpu_custom_call.1} parent=1 // pred_check_branch
      %402 = sbr.rel (0) target = $region33
    $region32: #{tpu_custom_call.1} parent=1 // pred_region
      %403 = dma.done [#allocation4], 256
    $region33: #{tpu_custom_call.1} parent=1 // pred_fallthru
      _
    %404 = vsyncpa [#allocation3], 1
    %405 = vsyncpa [#allocation6], 1
    %406 = vsyncpa [#allocation4], 1

</llo_original>
